<compile_context>
chip_gen: v6e
topology: v6e:2x2x1
jax: 0.10.0
libtpu: 0.0.40
codegen_flags: <defaults>
</compile_context>

<pallas_src>
import functools

import jax
import jax.numpy as jnp
import numpy as np
from jax.experimental import pallas as pl
from jax.experimental.pallas import tpu as pltpu

GAMMA = 3
ALPHA = (0.25, 0.75)  # parity with PyTorch __init__; unused in forward()
EPS = 1e-20

LANES = 1024   # lane-dense last dim (multiple of 128)
TM_MAX = 256   # rows per tile -> 1 MiB per f32 input buffer (v5e-safe)


def _round_up(x, m):
    return (x + m - 1) // m * m


def _focal_loss_kernel(x_ref, t_ref, partial_ref, *, gamma):
    # Cast to f32 inside the kernel; inputs travel HBM->VMEM in native dtype.
    x = x_ref[...].astype(jnp.float32)
    t = t_ref[...].astype(jnp.float32)
    error = 1.0 - jnp.abs(x - t) + EPS
    # gamma is a Python int -> lax.integer_pow (matches torch.pow w/ int exp).
    loss = -((1.0 - error) ** gamma) * jnp.log(error)
    # (tm, LANES) -> (tm//8, 8, LANES) is a pure regrouping of (8,128) tiles
    # (no cross-tile data movement); the axis-0 sum is plain VPU adds, so the
    # reduction stays lane/sublane resident.  The cross-lane reduce to a
    # scalar happens once, outside the kernel, on the small partials slab.
    partial_ref[...] = loss.reshape(-1, 8, LANES).sum(axis=0)


def focal_loss_bce_2d(inp, target, gamma=GAMMA, size_average=False):
    """JAX/Pallas equivalent of FocalLoss_BCE_2d.forward (NCHW inputs)."""
    assert inp.ndim == 4 and target.ndim == 4, "expected NCHW inputs"
    assert inp.shape == target.shape
    N, C, H, W = inp.shape
    samples_num = N * C
    total = N * C * H * W

    # Lane-dense tiling: rows is a multiple of tm, tm a multiple of 8.
    rows = _round_up((total + LANES - 1) // LANES, 8)
    tm = min(TM_MAX, rows)
    rows = _round_up(rows, tm)
    num_tiles = rows // tm
    padded = rows * LANES

    def _prep(a):
        flat = a.reshape(-1)  # keep native dtype; the f32 cast is in-kernel
        if padded != total:
            # Pad BOTH x and t with zeros: x == t -> error == 1 -> loss == 0.
            flat = jnp.concatenate(
                [flat, jnp.zeros((padded - total,), dtype=flat.dtype)]
            )
        return flat.reshape(rows, LANES)

    x2d = _prep(inp)
    t2d = _prep(target)

    in_bytes = 2 * padded * x2d.dtype.itemsize
    out_bytes = num_tiles * 8 * LANES * 4
    cost = pl.CostEstimate(
        flops=8 * padded,           # abs/sub/add/eps, (1-e), x^3 (2 mul), neg-mul
        transcendentals=padded,     # one log per element
        bytes_accessed=in_bytes + out_bytes,
    )

    partials = pl.pallas_call(
        functools.partial(_focal_loss_kernel, gamma=gamma),
        out_shape=jax.ShapeDtypeStruct((num_tiles * 8, LANES), jnp.float32),
        grid_spec=pltpu.PrefetchScalarGridSpec(
            num_scalar_prefetch=0,
            grid=(num_tiles,),
            in_specs=[
                pl.BlockSpec((tm, LANES), lambda i: (i, 0)),
                pl.BlockSpec((tm, LANES), lambda i: (i, 0)),
            ],
            out_specs=pl.BlockSpec((8, LANES), lambda i: (i, 0)),
        ),
        compiler_params=pltpu.CompilerParams(
            dimension_semantics=("parallel",),  # per-tile outputs -> megacore OK
        ),
        cost_estimate=cost,
    )(x2d, t2d)

    loss_sum = jnp.sum(partials)  # tiny epilogue reduce outside the kernel
    if size_average:
        return loss_sum / total
    return loss_sum / samples_num


def _reference(inp, target, gamma=GAMMA, size_average=False):
    x = inp.reshape(-1, inp.shape[2], inp.shape[3]).astype(jnp.float32)
    t = target.reshape(-1, target.shape[2], target.shape[3]).astype(jnp.float32)
    samples_num = t.shape[0]
    error = 1.0 - jnp.abs(x - t) + EPS
    loss = -((1.0 - error) ** gamma) * jnp.log(error)
    if size_average:
        return loss.mean()
    return loss.sum() / samples_num


if __name__ == "__main__":
    key = jax.random.PRNGKey(0)
    k1, k2 = jax.random.split(key)
    # Inputs in [0, 1] (BCE-style probabilities / soft targets).
    x = jax.random.uniform(k1, (2, 4, 16, 16), dtype=jnp.float32)
    t = jax.random.uniform(k2, (2, 4, 16, 16), dtype=jnp.float32)

    out = jax.block_until_ready(focal_loss_bce_2d(x, t))
    ref = jax.block_until_ready(_reference(x, t))

    if not np.allclose(np.asarray(out), np.asarray(ref), rtol=1e-5, atol=1e-5):
        raise AssertionError(f"mismatch: pallas={out} ref={ref}")

    print("KERNEL_OK")
</pallas_src>

<mosaic_0001>
module attributes {stable_mosaic.version = 11 : i64} {
  func.func @_focal_loss_kernel(%arg0: i32, %arg1: memref<8x1024xf32, #tpu.memory_space<vmem>>, %arg2: memref<8x1024xf32, #tpu.memory_space<vmem>>, %arg3: memref<8x1024xf32, #tpu.memory_space<vmem>>) attributes {dimension_semantics = [#tpu.dimension_semantics<parallel>], iteration_bounds = array<i64: 1>, scalar_prefetch = 0 : i64, scratch_operands = 0 : i64, tpu.core_type = #tpu.core_type<tc>, window_params = [{transform_indices = @transform_0, window_bounds = array<i64: 8, 1024>}, {transform_indices = @transform_1, window_bounds = array<i64: 8, 1024>}, {transform_indices = @transform_2, window_bounds = array<i64: 8, 1024>}]} {
    %c0 = arith.constant 0 : index
    %c0_0 = arith.constant 0 : index
    %0 = vector.load %arg1[%c0, %c0_0] : memref<8x1024xf32, #tpu.memory_space<vmem>>, vector<8x1024xf32>
    %c0_1 = arith.constant 0 : index
    %c0_2 = arith.constant 0 : index
    %1 = vector.load %arg2[%c0_1, %c0_2] : memref<8x1024xf32, #tpu.memory_space<vmem>>, vector<8x1024xf32>
    %2 = arith.subf %0, %1 : vector<8x1024xf32>
    %3 = math.absf %2 : vector<8x1024xf32>
    %cst = arith.constant 1.000000e+00 : f32
    %4 = vector.broadcast %cst : f32 to vector<8x1024xf32>
    %5 = arith.subf %4, %3 : vector<8x1024xf32>
    %cst_3 = arith.constant 9.99999968E-21 : f32
    %6 = vector.broadcast %cst_3 : f32 to vector<8x1024xf32>
    %7 = arith.addf %5, %6 : vector<8x1024xf32>
    %cst_4 = arith.constant 1.000000e+00 : f32
    %8 = vector.broadcast %cst_4 : f32 to vector<8x1024xf32>
    %9 = arith.subf %8, %7 : vector<8x1024xf32>
    %10 = arith.mulf %9, %9 : vector<8x1024xf32>
    %11 = arith.mulf %9, %10 : vector<8x1024xf32>
    %cst_5 = arith.constant 0.000000e+00 : f32
    %12 = vector.broadcast %cst_5 : f32 to vector<8x1024xf32>
    %13 = arith.subf %12, %11 : vector<8x1024xf32>
    %14 = math.log %7 : vector<8x1024xf32>
    %15 = arith.mulf %13, %14 : vector<8x1024xf32>
    %16 = vector.shape_cast %15 : vector<8x1024xf32> to vector<1x8x1024xf32>
    %cst_6 = arith.constant dense<0.000000e+00> : vector<8x1024xf32>
    %17 = vector.multi_reduction <add>, %16, %cst_6 [0] : vector<1x8x1024xf32> to vector<8x1024xf32>
    %c0_7 = arith.constant 0 : index
    %c0_8 = arith.constant 0 : index
    %18 = vector.load %arg3[%c0_7, %c0_8] : memref<8x1024xf32, #tpu.memory_space<vmem>>, vector<8x1024xf32>
    tpu.vector_store %arg3[%c0_7, %c0_8], %17 {strides = array<i32>} : memref<8x1024xf32, #tpu.memory_space<vmem>>, vector<8x1024xf32>,
    return
  }
  func.func @transform_0(%arg0: i32) -> (i32, i32) {
    %c0_i32 = arith.constant 0 : i32
    %c0_i32_0 = arith.constant 0 : i32
    return %arg0, %c0_i32 : i32, i32
  }
  func.func @transform_1(%arg0: i32) -> (i32, i32) {
    %c0_i32 = arith.constant 0 : i32
    %c0_i32_0 = arith.constant 0 : i32
    return %arg0, %c0_i32 : i32, i32
  }
  func.func @transform_2(%arg0: i32) -> (i32, i32) {
    %c0_i32 = arith.constant 0 : i32
    %c0_i32_0 = arith.constant 0 : i32
    return %arg0, %c0_i32 : i32, i32
  }
}

</mosaic_0001>

<llo_original>
// kernel: tpu_custom_call.1
$region0: #{tpu_custom_call.1}
  #allocation0 [shape = 'u32[]', space=smem, size = 0x4, offset = 0x4, fixed_abs, tag = 'smem constant byte address 0x4 - core index']
  #allocation1 [shape = 'u32[144,128]{1,0:T(1,128)}', space=vmem, size = 0x12000, scoped, tag = 'internal scratch']
  %s0 = inlined_call_operand.hbm [shape: f32[8,1024], index: 0, kind: input, shape index: {}]
  %s1 = inlined_call_operand.hbm [shape: f32[8,1024], index: 1, kind: input, shape index: {}]
  %s2 = inlined_call_operand.hbm [shape: f32[8,1024], index: 2, kind: output, shape index: {}]
  %s3 = sld [smem:[#allocation0]]
  $region26: #{tpu_custom_call.1} parent=0
    _
  %s5 = ssub.s32 1, %s3
  %s6 = scalar_select 0, %s5, %s3
  $region1: #{tpu_custom_call.1} parent=0
    #allocation2 [shape = 'u8[32768]{0}', space=vmem, size = 0x8000, scoped, tag = 'input window, operand 0, single buffered']
    #allocation3 [shape = 's32[1]{0}', space=sflag, size = 0x4, scoped, tag = 'scoped memory for tpu_custom_call.1']
    #allocation4 [shape = 's32[1]{0}', space=sflag, size = 0x4, scoped, tag = 'scoped memory for tpu_custom_call.1']
    #allocation5 [shape = 'u8[32768]{0}', space=vmem, size = 0x8000, scoped, tag = 'input window, operand 1, single buffered']
    #allocation6 [shape = 's32[1]{0}', space=sflag, size = 0x4, scoped, tag = 'scoped memory for tpu_custom_call.1']
    #allocation7 [shape = 'u8[32768]{0}', space=vmem, size = 0x8000, scoped, tag = 'output window, operand 0, single buffered']
    %7 = vsyncpa [#allocation3], 0
    %8 = vsyncpa [#allocation6], 0
    %9 = vsyncpa [#allocation4], 0
    // Predicated region
    $region2: #{tpu_custom_call.1} parent=1 // pred_check
      _
    $region3: #{tpu_custom_call.1} parent=1 // pred_check_branch
      %11 = sbr.rel (0) target = $region5
    $region4: #{tpu_custom_call.1} parent=1 // pred_region
      %s13 = ssub.s32 1024, 1024
      %14 = vsyncadd [#allocation3], %s13
      %s16 = sshll.u32 [#allocation2], 4
      %s17 = int_to_ptr.vmem [resolvable:$true] %s16
      %19 = dma.hbm_to_vmem [thread:$0]  %s0, 1024, %s17, [#allocation3]
    $region5: #{tpu_custom_call.1} parent=1 // pred_fallthru
      _
    // Predicated region
    $region6: #{tpu_custom_call.1} parent=1 // pred_check
      _
    $region7: #{tpu_custom_call.1} parent=1 // pred_check_branch
      %21 = sbr.rel (0) target = $region9
    $region8: #{tpu_custom_call.1} parent=1 // pred_region
      %s23 = ssub.s32 1024, 1024
      %24 = vsyncadd [#allocation6], %s23
      %s26 = sshll.u32 [#allocation5], 4
      %s27 = int_to_ptr.vmem [resolvable:$true] %s26
      %29 = dma.hbm_to_vmem [thread:$0]  %s1, 1024, %s27, [#allocation6]
    $region9: #{tpu_custom_call.1} parent=1 // pred_fallthru
      _
    // Predicated region
    $region10: #{tpu_custom_call.1} parent=1 // pred_check
      _
    $region11: #{tpu_custom_call.1} parent=1 // pred_check_branch
      %31 = sbr.rel (0) target = $region13
    $region12: #{tpu_custom_call.1} parent=1 // pred_region
      %32 = dma.done [#allocation3], 1024
    $region13: #{tpu_custom_call.1} parent=1 // pred_fallthru
      _
    // Predicated region
    $region14: #{tpu_custom_call.1} parent=1 // pred_check
      _
    $region15: #{tpu_custom_call.1} parent=1 // pred_check_branch
      %34 = sbr.rel (0) target = $region17
    $region16: #{tpu_custom_call.1} parent=1 // pred_region
      %35 = dma.done [#allocation6], 1024
    $region17: #{tpu_custom_call.1} parent=1 // pred_fallthru
      _
    %v36 = vld [vmem:[#allocation2] sm:$0xff]
    %v37 = vld [vmem:[#allocation2 + $0x8] sm:$0xff]
    %v38 = vld [vmem:[#allocation2 + $0x10] sm:$0xff]
    %v39 = vld [vmem:[#allocation2 + $0x18] sm:$0xff]
    %v40 = vld [vmem:[#allocation2 + $0x20] sm:$0xff]
    %v41 = vld [vmem:[#allocation2 + $0x28] sm:$0xff]
    %v42 = vld [vmem:[#allocation2 + $0x30] sm:$0xff]
    %v43 = vld [vmem:[#allocation2 + $0x38] sm:$0xff]
    %v44 = vld [vmem:[#allocation5] sm:$0xff]
    %v45 = vld [vmem:[#allocation5 + $0x8] sm:$0xff]
    %v46 = vld [vmem:[#allocation5 + $0x10] sm:$0xff]
    %v47 = vld [vmem:[#allocation5 + $0x18] sm:$0xff]
    %v48 = vld [vmem:[#allocation5 + $0x20] sm:$0xff]
    %v49 = vld [vmem:[#allocation5 + $0x28] sm:$0xff]
    %v50 = vld [vmem:[#allocation5 + $0x30] sm:$0xff]
    %v51 = vld [vmem:[#allocation5 + $0x38] sm:$0xff]
    %v52 = vsub.f32 %v36, %v44
    %v53 = vsub.f32 %v37, %v45
    %v54 = vsub.f32 %v38, %v46
    %v55 = vsub.f32 %v39, %v47
    %v56 = vsub.f32 %v40, %v48
    %v57 = vsub.f32 %v41, %v49
    %v58 = vsub.f32 %v42, %v50
    %v59 = vsub.f32 %v43, %v51
    %v60 = vand.u32 2147483647, %v52
    %v61 = vand.u32 2147483647, %v53
    %v62 = vand.u32 2147483647, %v54
    %v63 = vand.u32 2147483647, %v55
    %v64 = vand.u32 2147483647, %v56
    %v65 = vand.u32 2147483647, %v57
    %v66 = vand.u32 2147483647, %v58
    %v67 = vand.u32 2147483647, %v59
    %v68 = vsub.f32 1.0, %v60
    %v69 = vsub.f32 1.0, %v61
    %v70 = vsub.f32 1.0, %v62
    %v71 = vsub.f32 1.0, %v63
    %v72 = vsub.f32 1.0, %v64
    %v73 = vsub.f32 1.0, %v65
    %v74 = vsub.f32 1.0, %v66
    %v75 = vsub.f32 1.0, %v67
    %v76 = vadd.f32 %v68, 1e-20
    %v77 = vadd.f32 %v69, 1e-20
    %v78 = vadd.f32 %v70, 1e-20
    %v79 = vadd.f32 %v71, 1e-20
    %v80 = vadd.f32 %v72, 1e-20
    %v81 = vadd.f32 %v73, 1e-20
    %v82 = vadd.f32 %v74, 1e-20
    %v83 = vadd.f32 %v75, 1e-20
    %v84 = vsub.f32 1.0, %v76
    %v85 = vsub.f32 1.0, %v77
    %v86 = vsub.f32 1.0, %v78
    %v87 = vsub.f32 1.0, %v79
    %v88 = vsub.f32 1.0, %v80
    %v89 = vsub.f32 1.0, %v81
    %v90 = vsub.f32 1.0, %v82
    %v91 = vsub.f32 1.0, %v83
    %v92 = vmul.f32 %v84, %v84
    %v93 = vmul.f32 %v85, %v85
    %v94 = vmul.f32 %v86, %v86
    %v95 = vmul.f32 %v87, %v87
    %v96 = vmul.f32 %v88, %v88
    %v97 = vmul.f32 %v89, %v89
    %v98 = vmul.f32 %v90, %v90
    %v99 = vmul.f32 %v91, %v91
    %v100 = vmul.f32 %v84, %v92
    %v101 = vmul.f32 %v85, %v93
    %v102 = vmul.f32 %v86, %v94
    %v103 = vmul.f32 %v87, %v95
    %v104 = vmul.f32 %v88, %v96
    %v105 = vmul.f32 %v89, %v97
    %v106 = vmul.f32 %v90, %v98
    %v107 = vmul.f32 %v91, %v99
    %v108 = vsub.f32 0.0, %v100
    %v109 = vsub.f32 0.0, %v101
    %v110 = vsub.f32 0.0, %v102
    %v111 = vsub.f32 0.0, %v103
    %v112 = vsub.f32 0.0, %v104
    %v113 = vsub.f32 0.0, %v105
    %v114 = vsub.f32 0.0, %v106
    %v115 = vsub.f32 0.0, %v107
    %v116 = vlog2.pop %v76
    %v117 = vmul.f32 %v116, 0.6931472
    %v118 = vlog2.pop %v77
    %v119 = vmul.f32 %v118, 0.6931472
    %v120 = vlog2.pop %v78
    %v121 = vmul.f32 %v120, 0.6931472
    %v122 = vlog2.pop %v79
    %v123 = vmul.f32 %v122, 0.6931472
    %v124 = vlog2.pop %v80
    %v125 = vmul.f32 %v124, 0.6931472
    %v126 = vlog2.pop %v81
    %v127 = vmul.f32 %v126, 0.6931472
    %v128 = vlog2.pop %v82
    %v129 = vmul.f32 %v128, 0.6931472
    %v130 = vlog2.pop %v83
    %v131 = vmul.f32 %v130, 0.6931472
    %v132 = vmul.f32 %v108, %v117
    %v133 = vmul.f32 %v109, %v119
    %v134 = vmul.f32 %v110, %v121
    %v135 = vmul.f32 %v111, %v123
    %v136 = vmul.f32 %v112, %v125
    %v137 = vmul.f32 %v113, %v127
    %v138 = vmul.f32 %v114, %v129
    %v139 = vmul.f32 %v115, %v131
    %v140 = vadd.f32 %v132, 0.0
    %v141 = vadd.f32 %v133, 0.0
    %v142 = vadd.f32 %v134, 0.0
    %v143 = vadd.f32 %v135, 0.0
    %v144 = vadd.f32 %v136, 0.0
    %v145 = vadd.f32 %v137, 0.0
    %v146 = vadd.f32 %v138, 0.0
    %v147 = vadd.f32 %v139, 0.0
    %148 = vst [vmem:[#allocation7] sm:$0xff] %v140
    %149 = vst [vmem:[#allocation7 + $0x8] sm:$0xff] %v141
    %150 = vst [vmem:[#allocation7 + $0x10] sm:$0xff] %v142
    %151 = vst [vmem:[#allocation7 + $0x18] sm:$0xff] %v143
    %152 = vst [vmem:[#allocation7 + $0x20] sm:$0xff] %v144
    %153 = vst [vmem:[#allocation7 + $0x28] sm:$0xff] %v145
    %154 = vst [vmem:[#allocation7 + $0x30] sm:$0xff] %v146
    %155 = vst [vmem:[#allocation7 + $0x38] sm:$0xff] %v147
    // Predicated region
    $region18: #{tpu_custom_call.1} parent=1 // pred_check
      _
    $region19: #{tpu_custom_call.1} parent=1 // pred_check_branch
      %157 = sbr.rel (0) target = $region21
    $region20: #{tpu_custom_call.1} parent=1 // pred_region
      %s159 = ssub.s32 1024, 1024
      %160 = vsyncadd [#allocation4], %s159
      %s162 = sshll.u32 [#allocation7], 4
      %s163 = int_to_ptr.vmem [resolvable:$true] %s162
      %165 = dma.vmem_to_hbm [thread:$0]  %s163, 1024, %s2, [#allocation4]
    $region21: #{tpu_custom_call.1} parent=1 // pred_fallthru
      _
    // Predicated region
    $region22: #{tpu_custom_call.1} parent=1 // pred_check
      _
    $region23: #{tpu_custom_call.1} parent=1 // pred_check_branch
      %167 = sbr.rel (0) target = $region25
    $region24: #{tpu_custom_call.1} parent=1 // pred_region
      %168 = dma.done [#allocation4], 1024
    $region25: #{tpu_custom_call.1} parent=1 // pred_fallthru
      _
    %169 = vsyncpa [#allocation3], 1
    %170 = vsyncpa [#allocation6], 1
    %171 = vsyncpa [#allocation4], 1

</llo_original>
